<compile_context>
chip_gen: v5e
topology: v5e:2x2
jax: 0.10.0
libtpu: 0.0.40
codegen_flags: <defaults>
</compile_context>

<pallas_src>
import functools

import jax
import jax.numpy as jnp
from jax.experimental import pallas as pl
from jax.experimental.pallas import tpu as pltpu


OUT_LANES = 128                       # lane-dense packed output slab width
COL_LOGP, COL_ENT, COL_VAL = 0, 1, 2
_NEG_BIG = -1e30                      # finite "-inf": keeps (m_old-m_new)*0 == 0


def _round_up(x, m):
    return (x + m - 1) // m * m


def actor_critic_kernel(emb_ref, act_ref,
                        w1a_ref, b1a_ref, wlm_ref, blm_ref,
                        w1c_ref, b1c_ref, wv_ref, bv_ref,
                        out_ref,
                        h_sc, m_sc, s_sc, t_sc, la_sc, val_sc):
    """Grid = (M tiles, V tiles). The vocab axis is an online-softmax reduction."""
    v_idx = pl.program_id(1)
    num_v = pl.num_programs(1)
    tile_v = wlm_ref.shape[1]

    # ---- once per row tile: actor + critic backbones, accumulator init ----
    @pl.when(v_idx == 0)
    def _init():
        x = emb_ref[...]                                             # (TM, H) bf16
        # Both HxH MXU matmuls back-to-back; the critic value (a cheap VPU
        # broadcast-multiply + lane reduce) is computed here so the final
        # vocab step stays short and overlaps with the next tile's prefetch.
        ha = jnp.tanh(jnp.dot(x, w1a_ref[...],
                              preferred_element_type=jnp.float32) + b1a_ref[...])
        hc = jnp.tanh(jnp.dot(x, w1c_ref[...],
                              preferred_element_type=jnp.float32) + b1c_ref[...])
        h_sc[...] = ha.astype(jnp.bfloat16)
        val_sc[...] = (jnp.sum(hc * wv_ref[...], axis=-1, keepdims=True)
                       + bv_ref[...])
        m_sc[...] = jnp.full_like(m_sc, _NEG_BIG)
        s_sc[...] = jnp.zeros_like(s_sc)
        t_sc[...] = jnp.zeros_like(t_sc)
        la_sc[...] = jnp.zeros_like(la_sc)

    # ---- LM head for this vocab tile (bf16 MXU, f32 accumulation) ----
    logits = jnp.dot(h_sc[...], wlm_ref[...],
                     preferred_element_type=jnp.float32) + blm_ref[...]  # (TM, TV)

    # Online (flash) softmax statistics in the shifted domain:
    #   s = sum e^{z-m},  t = sum e^{z-m} * (z - m)   (m = running max)
    # so entropy = log(s) - t/s without large-magnitude cancellation.
    m_old = m_sc[...]
    s_old = s_sc[...]
    m_new = jnp.maximum(m_old, jnp.max(logits, axis=-1, keepdims=True))
    scale = jnp.exp(m_old - m_new)
    z = logits - m_new
    e = jnp.exp(z)
    t_sc[...] = (scale * (t_sc[...] + (m_old - m_new) * s_old)
                 + jnp.sum(e * z, axis=-1, keepdims=True))
    s_sc[...] = scale * s_old + jnp.sum(e, axis=-1, keepdims=True)
    m_sc[...] = m_new

    # Gather the taken-action logit: loop-invariant iota, vocab-tile offset
    # folded into the (TM, 1) action column (no (TM, TV) add per step).
    lane = jax.lax.broadcasted_iota(jnp.int32, logits.shape, 1)
    tgt = act_ref[...] - v_idx * tile_v                              # (TM, 1)
    la_sc[...] += jnp.sum(jnp.where(lane == tgt, logits, 0.0),
                          axis=-1, keepdims=True)

    # ---- finalize: cheap log / divide / lane-dense packed store ----
    @pl.when(v_idx == num_v - 1)
    def _finalize():
        s = s_sc[...]
        log_s = jnp.log(s)
        log_prob = la_sc[...] - (m_sc[...] + log_s)
        entropy = log_s - t_sc[...] / s        # exact divide; only (TM, 1) elems

        col = jax.lax.broadcasted_iota(jnp.int32, out_ref.shape, 1)  # (TM, 128)
        out_ref[...] = jnp.where(col == COL_LOGP, log_prob,
                       jnp.where(col == COL_ENT, entropy,
                       jnp.where(col == COL_VAL, val_sc[...], 0.0)))


def _vmem_estimate_bytes(tile_m, tile_v, hidden, lm_head_buffers):
    """Rough scoped-VMEM footprint of all blocks + scratch (with (8,128) padding)."""
    def blk(r, c, itemsize):
        return _round_up(r, 8) * _round_up(c, 128) * itemsize
    b = 0
    b += 2 * blk(tile_m, hidden, 2)                 # embeddings (double-buffered)
    b += 2 * blk(tile_m, 1, 4)                      # action ids
    b += 2 * blk(hidden, hidden, 2)                 # actor + critic W1 (Buffered(1))
    b += 2 * blk(1, hidden, 4)                      # actor + critic b1
    b += lm_head_buffers * blk(hidden, tile_v, 2)   # LM head W tiles
    b += lm_head_buffers * blk(1, tile_v, 4)        # LM head b tiles
    b += blk(1, hidden, 4) + blk(1, 1, 4)           # value head
    b += 2 * blk(tile_m, OUT_LANES, 4)              # packed output slab
    b += blk(tile_m, hidden, 2)                     # h_sc
    b += 5 * blk(tile_m, 1, 4)                      # m/s/t/la/val scratch
    return b


@functools.partial(jax.jit, static_argnames=("prompt_len", "tile_m", "tile_v",
                                              "lm_head_buffers"))
def lm_multi_actor_critic_forward(obs, actions, params, *, prompt_len,
                                  tile_m=256, tile_v=512, lm_head_buffers=2):
    """obs: [B, S] int32 (prompt + generated tokens), actions: [B, A] int32."""
    B, A = actions.shape
    E = params["embed"]                        # (V, H) f32
    H = E.shape[1]
    V = params["w_lm"].shape[1]

    tile_v = min(tile_v, V)
    if V % tile_v != 0:
        raise ValueError("vocab size must be divisible by tile_v")

    M = B * A
    # Keep >= 2 blocks on the "parallel" M axis when M allows, so both v7x
    # TensorCores get work; tile_m stays a multiple of 8.
    if M > 8:
        tile_m = min(tile_m, _round_up(pl.cdiv(M, 2), 8))
    else:
        tile_m = 8
    m_tiles = pl.cdiv(M, tile_m)
    M_pad = m_tiles * tile_m

    # Context token for action t is obs[:, prompt_len - 1 + t] (next-token pred).
    # TODO(synk): for very large M*H, gather embedding rows inside the kernel
    # instead of materializing the padded (M_pad, H) activation array.
    ctx = jax.lax.dynamic_slice_in_dim(obs, prompt_len - 1, A, axis=1)  # (B, A)
    emb = jnp.take(E, ctx.reshape(-1), axis=0)                          # (M, H)
    emb = jnp.pad(emb, ((0, M_pad - M), (0, 0))).astype(jnp.bfloat16)
    act = jnp.pad(actions.reshape(-1, 1).astype(jnp.int32),
                  ((0, M_pad - M), (0, 0)))                             # (M_pad, 1)

    # bf16 weights for the MXU matmuls; biases / value head stay f32.
    w1a = params["w1_actor"].astype(jnp.bfloat16)
    w1c = params["w1_critic"].astype(jnp.bfloat16)
    wlm = params["w_lm"].astype(jnp.bfloat16)
    wv = params["w_value"].reshape(1, H)                                # (1, H) f32

    once = pl.Buffered(1)            # constant index map -> DMA'd once, 1 buffer
    lm_buf = pl.Buffered(lm_head_buffers)

    grid_spec = pltpu.PrefetchScalarGridSpec(
        num_scalar_prefetch=0,
        grid=(m_tiles, V // tile_v),
        in_specs=[
            pl.BlockSpec((tile_m, H), lambda m, v: (m, 0)),     # embeddings
            pl.BlockSpec((tile_m, 1), lambda m, v: (m, 0)),     # action ids
            pl.BlockSpec((H, H), lambda m, v: (0, 0), pipeline_mode=once),
            pl.BlockSpec((1, H), lambda m, v: (0, 0), pipeline_mode=once),
            pl.BlockSpec((H, tile_v), lambda m, v: (0, v), pipeline_mode=lm_buf),
            pl.BlockSpec((1, tile_v), lambda m, v: (0, v), pipeline_mode=lm_buf),
            pl.BlockSpec((H, H), lambda m, v: (0, 0), pipeline_mode=once),
            pl.BlockSpec((1, H), lambda m, v: (0, 0), pipeline_mode=once),
            pl.BlockSpec((1, H), lambda m, v: (0, 0), pipeline_mode=once),
            pl.BlockSpec((1, 1), lambda m, v: (0, 0), pipeline_mode=once),
        ],
        out_specs=pl.BlockSpec((tile_m, OUT_LANES), lambda m, v: (m, 0)),
        scratch_shapes=[
            pltpu.VMEM((tile_m, H), jnp.bfloat16),   # actor hidden (reused over V)
            pltpu.VMEM((tile_m, 1), jnp.float32),    # running max
            pltpu.VMEM((tile_m, 1), jnp.float32),    # running sum exp
            pltpu.VMEM((tile_m, 1), jnp.float32),    # running sum exp*(z-m)
            pltpu.VMEM((tile_m, 1), jnp.float32),    # logit at taken action
            pltpu.VMEM((tile_m, 1), jnp.float32),    # critic value
        ],
    )

    # Scoped VMEM limit sized from the actual blocks (defaults of 16/32 MiB
    # would reject the larger tiles this kernel is designed for).
    vmem_est = _vmem_estimate_bytes(tile_m, tile_v, H, lm_head_buffers)
    vmem_limit = min(max(int(vmem_est * 1.25) + (4 << 20), 32 << 20), 100 << 20)

    slab = pl.pallas_call(
        actor_critic_kernel,
        out_shape=jax.ShapeDtypeStruct((M_pad, OUT_LANES), jnp.float32),
        grid_spec=grid_spec,
        compiler_params=pltpu.CompilerParams(
            dimension_semantics=("parallel", "arbitrary"),
            vmem_limit_bytes=vmem_limit),
    )(emb, act,
      w1a, params["b1_actor"], wlm, params["b_lm"],
      w1c, params["b1_critic"], wv, params["b_value"])

    logp = slab[:M, COL_LOGP].reshape(B, A)
    ent = slab[:M, COL_ENT].reshape(B, A)
    val = slab[:M, COL_VAL].reshape(B, A)
    # ActorCriticOutput(values, log_prob, entropy)
    return {"values": val, "log_prob": logp, "entropy": ent}


def make_params(key, vocab, hidden):
    ks = jax.random.split(key, 9)
    s = 0.02
    return {
        "embed":     s * jax.random.normal(ks[0], (vocab, hidden), jnp.float32),
        "w1_actor":  s * jax.random.normal(ks[1], (hidden, hidden), jnp.float32),
        "b1_actor":  0.01 * jax.random.normal(ks[2], (1, hidden), jnp.float32),
        "w_lm":      s * jax.random.normal(ks[3], (hidden, vocab), jnp.float32),
        "b_lm":      0.01 * jax.random.normal(ks[4], (1, vocab), jnp.float32),
        "w1_critic": s * jax.random.normal(ks[5], (hidden, hidden), jnp.float32),
        "b1_critic": 0.01 * jax.random.normal(ks[6], (1, hidden), jnp.float32),
        "w_value":   s * jax.random.normal(ks[7], (hidden, 1), jnp.float32),
        "b_value":   0.01 * jax.random.normal(ks[8], (1, 1), jnp.float32),
    }


def reference_forward(obs, actions, params, *, prompt_len):
    """Pure-JAX reference with the same bf16 matmul-input rounding policy."""
    A = actions.shape[1]
    ctx = obs[:, prompt_len - 1:prompt_len - 1 + A]
    bf = lambda a: a.astype(jnp.bfloat16).astype(jnp.float32)
    x = bf(jnp.take(params["embed"], ctx, axis=0))
    h = jnp.tanh(x @ bf(params["w1_actor"]) + params["b1_actor"][0])
    logits = bf(h) @ bf(params["w_lm"]) + params["b_lm"][0]
    logp_all = jax.nn.log_softmax(logits, axis=-1)
    p = jnp.exp(logp_all)
    entropy = -jnp.sum(p * logp_all, axis=-1)
    log_prob = jnp.take_along_axis(logp_all, actions[..., None], axis=-1)[..., 0]
    hc = jnp.tanh(x @ bf(params["w1_critic"]) + params["b1_critic"][0])
    values = (hc @ params["w_value"] + params["b_value"][0])[..., 0]
    return {"values": values, "log_prob": log_prob, "entropy": entropy}


if __name__ == "__main__":
    B = 2
    PROMPT_LEN = 8
    GEN_LEN = 8
    HIDDEN = 128
    VOCAB = 256

    key = jax.random.PRNGKey(0)
    k_obs, k_act, k_par = jax.random.split(key, 3)

    params = make_params(k_par, VOCAB, HIDDEN)
    prompt = jax.random.randint(k_obs, (B, PROMPT_LEN), 0, VOCAB, dtype=jnp.int32)
    actions = jax.random.randint(k_act, (B, GEN_LEN), 0, VOCAB, dtype=jnp.int32)
    obs = jnp.concatenate([prompt, actions], axis=1)       # [B, S] prompt + gen

    # tile_v=128 -> 2 vocab tiles (exercises the online-softmax reduction);
    # tile_m auto-shrinks so the parallel M axis has 2 blocks.
    out = lm_multi_actor_critic_forward(obs, actions, params,
                                        prompt_len=PROMPT_LEN,
                                        tile_m=128, tile_v=128)
    jax.block_until_ready(out)

    ref = reference_forward(obs, actions, params, prompt_len=PROMPT_LEN)
    for name in ("values", "log_prob", "entropy"):
        assert out[name].shape == (B, GEN_LEN), name
        assert jnp.allclose(out[name], ref[name], atol=1e-3, rtol=1e-3), name

    print("KERNEL_OK")
</pallas_src>

<mosaic_0001>
module attributes {stable_mosaic.version = 11 : i64} {
  func.func @actor_critic_kernel(%arg0: i32, %arg1: i32, %arg2: memref<8x128xbf16, #tpu.memory_space<vmem>>, %arg3: memref<8x1xi32, #tpu.memory_space<vmem>>, %arg4: memref<128x128xbf16, #tpu.memory_space<vmem>>, %arg5: memref<1x128xf32, #tpu.memory_space<vmem>>, %arg6: memref<128x128xbf16, #tpu.memory_space<vmem>>, %arg7: memref<1x128xf32, #tpu.memory_space<vmem>>, %arg8: memref<128x128xbf16, #tpu.memory_space<vmem>>, %arg9: memref<1x128xf32, #tpu.memory_space<vmem>>, %arg10: memref<1x128xf32, #tpu.memory_space<vmem>>, %arg11: memref<1x1xf32, #tpu.memory_space<vmem>>, %arg12: memref<8x128xf32, #tpu.memory_space<vmem>>, %arg13: memref<8x128xbf16, #tpu.memory_space<vmem>>, %arg14: memref<8x1xf32, #tpu.memory_space<vmem>>, %arg15: memref<8x1xf32, #tpu.memory_space<vmem>>, %arg16: memref<8x1xf32, #tpu.memory_space<vmem>>, %arg17: memref<8x1xf32, #tpu.memory_space<vmem>>, %arg18: memref<8x1xf32, #tpu.memory_space<vmem>>) attributes {dimension_semantics = [#tpu.dimension_semantics<parallel>, #tpu.dimension_semantics<arbitrary>], iteration_bounds = array<i64: 2, 2>, scalar_prefetch = 0 : i64, scratch_operands = 6 : i64, tpu.core_type = #tpu.core_type<tc>, window_params = [{transform_indices = @transform_0, window_bounds = array<i64: 8, 128>}, {transform_indices = @transform_1, window_bounds = array<i64: 8, 1>}, {pipeline_mode = #tpu.pipeline_mode<synchronous>, transform_indices = @transform_2, window_bounds = array<i64: 128, 128>}, {pipeline_mode = #tpu.pipeline_mode<synchronous>, transform_indices = @transform_3, window_bounds = array<i64: 1, 128>}, {pipeline_mode = #tpu.pipeline_mode<double_buffered>, transform_indices = @transform_4, window_bounds = array<i64: 128, 128>}, {pipeline_mode = #tpu.pipeline_mode<double_buffered>, transform_indices = @transform_5, window_bounds = array<i64: 1, 128>}, {pipeline_mode = #tpu.pipeline_mode<synchronous>, transform_indices = @transform_6, window_bounds = array<i64: 128, 128>}, {pipeline_mode = #tpu.pipeline_mode<synchronous>, transform_indices = @transform_7, window_bounds = array<i64: 1, 128>}, {pipeline_mode = #tpu.pipeline_mode<synchronous>, transform_indices = @transform_8, window_bounds = array<i64: 1, 128>}, {pipeline_mode = #tpu.pipeline_mode<synchronous>, transform_indices = @transform_9, window_bounds = array<i64: 1, 1>}, {transform_indices = @transform_10, window_bounds = array<i64: 8, 128>}]} {
    %c0_i32 = arith.constant 0 : i32
    %0 = arith.cmpi eq, %arg1, %c0_i32 : i32
    %1 = arith.extui %0 : i1 to i32
    %c0_i32_0 = arith.constant 0 : i32
    %2 = arith.cmpi ne, %1, %c0_i32_0 : i32
    scf.if %2 {
      %c0_30 = arith.constant 0 : index
      %c0_31 = arith.constant 0 : index
      %52 = vector.load %arg2[%c0_30, %c0_31] : memref<8x128xbf16, #tpu.memory_space<vmem>>, vector<8x128xbf16>
      %c0_32 = arith.constant 0 : index
      %c0_33 = arith.constant 0 : index
      %53 = vector.load %arg4[%c0_32, %c0_33] : memref<128x128xbf16, #tpu.memory_space<vmem>>, vector<128x128xbf16>
      %cst_34 = arith.constant dense<0.000000e+00> : vector<8x128xf32>
      %54 = tpu.matmul %52, %53, %cst_34 {dimension_numbers = #tpu.dot_dimension_numbers<[1], [0], [0], [1], [0, 0, 1, 1], [], []>} : vector<8x128xbf16>, vector<128x128xbf16>, vector<8x128xf32> -> vector<8x128xf32>
      %c0_35 = arith.constant 0 : index
      %c0_36 = arith.constant 0 : index
      %55 = vector.load %arg5[%c0_35, %c0_36] : memref<1x128xf32, #tpu.memory_space<vmem>>, vector<1x128xf32>
      %56 = vector.broadcast %55 : vector<1x128xf32> to vector<8x128xf32>
      %57 = arith.addf %54, %56 : vector<8x128xf32>
      %58 = math.tanh %57 : vector<8x128xf32>
      %c0_37 = arith.constant 0 : index
      %c0_38 = arith.constant 0 : index
      %59 = vector.load %arg8[%c0_37, %c0_38] : memref<128x128xbf16, #tpu.memory_space<vmem>>, vector<128x128xbf16>
      %cst_39 = arith.constant dense<0.000000e+00> : vector<8x128xf32>
      %60 = tpu.matmul %52, %59, %cst_39 {dimension_numbers = #tpu.dot_dimension_numbers<[1], [0], [0], [1], [0, 0, 1, 1], [], []>} : vector<8x128xbf16>, vector<128x128xbf16>, vector<8x128xf32> -> vector<8x128xf32>
      %c0_40 = arith.constant 0 : index
      %c0_41 = arith.constant 0 : index
      %61 = vector.load %arg9[%c0_40, %c0_41] : memref<1x128xf32, #tpu.memory_space<vmem>>, vector<1x128xf32>
      %62 = vector.broadcast %61 : vector<1x128xf32> to vector<8x128xf32>
      %63 = arith.addf %60, %62 : vector<8x128xf32>
      %64 = math.tanh %63 : vector<8x128xf32>
      %65 = arith.truncf %58 : vector<8x128xf32> to vector<8x128xbf16>
      %c0_42 = arith.constant 0 : index
      %c0_43 = arith.constant 0 : index
      %66 = vector.load %arg13[%c0_42, %c0_43] : memref<8x128xbf16, #tpu.memory_space<vmem>>, vector<8x128xbf16>
      tpu.vector_store %arg13[%c0_42, %c0_43], %65 {strides = array<i32>} : memref<8x128xbf16, #tpu.memory_space<vmem>>, vector<8x128xbf16>,
      %c0_44 = arith.constant 0 : index
      %c0_45 = arith.constant 0 : index
      %67 = vector.load %arg10[%c0_44, %c0_45] : memref<1x128xf32, #tpu.memory_space<vmem>>, vector<1x128xf32>
      %68 = vector.broadcast %67 : vector<1x128xf32> to vector<8x128xf32>
      %69 = arith.mulf %64, %68 : vector<8x128xf32>
      %cst_46 = arith.constant dense<0.000000e+00> : vector<8xf32>
      %70 = vector.multi_reduction <add>, %69, %cst_46 [1] : vector<8x128xf32> to vector<8xf32>
      %71 = vector.shape_cast %70 : vector<8xf32> to vector<8x1xf32>
      %c0_47 = arith.constant 0 : index
      %c0_48 = arith.constant 0 : index
      %72 = vector.load %arg11[%c0_47, %c0_48] : memref<1x1xf32, #tpu.memory_space<vmem>>, vector<1x1xf32>
      %73 = vector.broadcast %72 : vector<1x1xf32> to vector<8x1xf32>
      %74 = arith.addf %71, %73 : vector<8x1xf32>
      %c0_49 = arith.constant 0 : index
      %c0_50 = arith.constant 0 : index
      %75 = vector.load %arg18[%c0_49, %c0_50] : memref<8x1xf32, #tpu.memory_space<vmem>>, vector<8x1xf32>
      tpu.vector_store %arg18[%c0_49, %c0_50], %74 {strides = array<i32>} : memref<8x1xf32, #tpu.memory_space<vmem>>, vector<8x1xf32>,
      %cst_51 = arith.constant -1.000000e+30 : f32
      %76 = vector.broadcast %cst_51 : f32 to vector<8x1xf32>
      %c0_52 = arith.constant 0 : index
      %c0_53 = arith.constant 0 : index
      %77 = vector.load %arg14[%c0_52, %c0_53] : memref<8x1xf32, #tpu.memory_space<vmem>>, vector<8x1xf32>
      tpu.vector_store %arg14[%c0_52, %c0_53], %76 {strides = array<i32>} : memref<8x1xf32, #tpu.memory_space<vmem>>, vector<8x1xf32>,
      %cst_54 = arith.constant 0.000000e+00 : f32
      %78 = vector.broadcast %cst_54 : f32 to vector<8x1xf32>
      %c0_55 = arith.constant 0 : index
      %c0_56 = arith.constant 0 : index
      %79 = vector.load %arg15[%c0_55, %c0_56] : memref<8x1xf32, #tpu.memory_space<vmem>>, vector<8x1xf32>
      tpu.vector_store %arg15[%c0_55, %c0_56], %78 {strides = array<i32>} : memref<8x1xf32, #tpu.memory_space<vmem>>, vector<8x1xf32>,
      %cst_57 = arith.constant 0.000000e+00 : f32
      %80 = vector.broadcast %cst_57 : f32 to vector<8x1xf32>
      %c0_58 = arith.constant 0 : index
      %c0_59 = arith.constant 0 : index
      %81 = vector.load %arg16[%c0_58, %c0_59] : memref<8x1xf32, #tpu.memory_space<vmem>>, vector<8x1xf32>
      tpu.vector_store %arg16[%c0_58, %c0_59], %80 {strides = array<i32>} : memref<8x1xf32, #tpu.memory_space<vmem>>, vector<8x1xf32>,
      %cst_60 = arith.constant 0.000000e+00 : f32
      %82 = vector.broadcast %cst_60 : f32 to vector<8x1xf32>
      %c0_61 = arith.constant 0 : index
      %c0_62 = arith.constant 0 : index
      %83 = vector.load %arg17[%c0_61, %c0_62] : memref<8x1xf32, #tpu.memory_space<vmem>>, vector<8x1xf32>
      tpu.vector_store %arg17[%c0_61, %c0_62], %82 {strides = array<i32>} : memref<8x1xf32, #tpu.memory_space<vmem>>, vector<8x1xf32>,
    } else {
    }
    %c0 = arith.constant 0 : index
    %c0_1 = arith.constant 0 : index
    %3 = vector.load %arg13[%c0, %c0_1] : memref<8x128xbf16, #tpu.memory_space<vmem>>, vector<8x128xbf16>
    %c0_2 = arith.constant 0 : index
    %c0_3 = arith.constant 0 : index
    %4 = vector.load %arg6[%c0_2, %c0_3] : memref<128x128xbf16, #tpu.memory_space<vmem>>, vector<128x128xbf16>
    %cst = arith.constant dense<0.000000e+00> : vector<8x128xf32>
    %5 = tpu.matmul %3, %4, %cst {dimension_numbers = #tpu.dot_dimension_numbers<[1], [0], [0], [1], [0, 0, 1, 1], [], []>} : vector<8x128xbf16>, vector<128x128xbf16>, vector<8x128xf32> -> vector<8x128xf32>
    %c0_4 = arith.constant 0 : index
    %c0_5 = arith.constant 0 : index
    %6 = vector.load %arg7[%c0_4, %c0_5] : memref<1x128xf32, #tpu.memory_space<vmem>>, vector<1x128xf32>
    %7 = vector.broadcast %6 : vector<1x128xf32> to vector<8x128xf32>
    %8 = arith.addf %5, %7 : vector<8x128xf32>
    %c0_6 = arith.constant 0 : index
    %c0_7 = arith.constant 0 : index
    %9 = vector.load %arg14[%c0_6, %c0_7] : memref<8x1xf32, #tpu.memory_space<vmem>>, vector<8x1xf32>
    %c0_8 = arith.constant 0 : index
    %c0_9 = arith.constant 0 : index
    %10 = vector.load %arg15[%c0_8, %c0_9] : memref<8x1xf32, #tpu.memory_space<vmem>>, vector<8x1xf32>
    %cst_10 = arith.constant dense<0xFF800000> : vector<8xf32>
    %11 = vector.multi_reduction <maximumf>, %8, %cst_10 [1] : vector<8x128xf32> to vector<8xf32>
    %12 = vector.shape_cast %11 : vector<8xf32> to vector<8x1xf32>
    %13 = arith.maximumf %9, %12 : vector<8x1xf32>
    %14 = arith.subf %9, %13 : vector<8x1xf32>
    %15 = math.exp %14 : vector<8x1xf32>
    %16 = vector.broadcast %13 : vector<8x1xf32> to vector<8x128xf32>
    %17 = arith.subf %8, %16 : vector<8x128xf32>
    %18 = math.exp %17 : vector<8x128xf32>
    %c0_11 = arith.constant 0 : index
    %c0_12 = arith.constant 0 : index
    %19 = vector.load %arg16[%c0_11, %c0_12] : memref<8x1xf32, #tpu.memory_space<vmem>>, vector<8x1xf32>
    %20 = arith.subf %9, %13 : vector<8x1xf32>
    %21 = arith.mulf %20, %10 : vector<8x1xf32>
    %22 = arith.addf %19, %21 : vector<8x1xf32>
    %23 = arith.mulf %15, %22 : vector<8x1xf32>
    %24 = arith.mulf %18, %17 : vector<8x128xf32>
    %cst_13 = arith.constant dense<0.000000e+00> : vector<8xf32>
    %25 = vector.multi_reduction <add>, %24, %cst_13 [1] : vector<8x128xf32> to vector<8xf32>
    %26 = vector.shape_cast %25 : vector<8xf32> to vector<8x1xf32>
    %27 = arith.addf %23, %26 : vector<8x1xf32>
    %c0_14 = arith.constant 0 : index
    %c0_15 = arith.constant 0 : index
    %28 = vector.load %arg16[%c0_14, %c0_15] : memref<8x1xf32, #tpu.memory_space<vmem>>, vector<8x1xf32>
    tpu.vector_store %arg16[%c0_14, %c0_15], %27 {strides = array<i32>} : memref<8x1xf32, #tpu.memory_space<vmem>>, vector<8x1xf32>,
    %29 = arith.mulf %15, %10 : vector<8x1xf32>
    %cst_16 = arith.constant dense<0.000000e+00> : vector<8xf32>
    %30 = vector.multi_reduction <add>, %18, %cst_16 [1] : vector<8x128xf32> to vector<8xf32>
    %31 = vector.shape_cast %30 : vector<8xf32> to vector<8x1xf32>
    %32 = arith.addf %29, %31 : vector<8x1xf32>
    %c0_17 = arith.constant 0 : index
    %c0_18 = arith.constant 0 : index
    %33 = vector.load %arg15[%c0_17, %c0_18] : memref<8x1xf32, #tpu.memory_space<vmem>>, vector<8x1xf32>
    tpu.vector_store %arg15[%c0_17, %c0_18], %32 {strides = array<i32>} : memref<8x1xf32, #tpu.memory_space<vmem>>, vector<8x1xf32>,
    %c0_19 = arith.constant 0 : index
    %c0_20 = arith.constant 0 : index
    %34 = vector.load %arg14[%c0_19, %c0_20] : memref<8x1xf32, #tpu.memory_space<vmem>>, vector<8x1xf32>
    tpu.vector_store %arg14[%c0_19, %c0_20], %13 {strides = array<i32>} : memref<8x1xf32, #tpu.memory_space<vmem>>, vector<8x1xf32>,
    %35 = tpu.iota {dimensions = array<i32: 1>} : vector<8x128xi32>
    %c0_21 = arith.constant 0 : index
    %c0_22 = arith.constant 0 : index
    %36 = vector.load %arg3[%c0_21, %c0_22] : memref<8x1xi32, #tpu.memory_space<vmem>>, vector<8x1xi32>
    %c128_i32 = arith.constant 128 : i32
    %37 = arith.muli %arg1, %c128_i32 : i32
    %38 = vector.broadcast %37 : i32 to vector<8x1xi32>
    %39 = arith.subi %36, %38 : vector<8x1xi32>
    %c0_23 = arith.constant 0 : index
    %c0_24 = arith.constant 0 : index
    %40 = vector.load %arg17[%c0_23, %c0_24] : memref<8x1xf32, #tpu.memory_space<vmem>>, vector<8x1xf32>
    %41 = vector.broadcast %39 : vector<8x1xi32> to vector<8x128xi32>
    %42 = arith.cmpi eq, %35, %41 : vector<8x128xi32>
    %cst_25 = arith.constant 0.000000e+00 : f32
    %43 = vector.broadcast %cst_25 : f32 to vector<8x128xf32>
    %44 = arith.select %42, %8, %43 : vector<8x128xi1>, vector<8x128xf32>
    %cst_26 = arith.constant dense<0.000000e+00> : vector<8xf32>
    %45 = vector.multi_reduction <add>, %44, %cst_26 [1] : vector<8x128xf32> to vector<8xf32>
    %46 = vector.shape_cast %45 : vector<8xf32> to vector<8x1xf32>
    %47 = arith.addf %40, %46 : vector<8x1xf32>
    %c0_27 = arith.constant 0 : index
    %c0_28 = arith.constant 0 : index
    %48 = vector.load %arg17[%c0_27, %c0_28] : memref<8x1xf32, #tpu.memory_space<vmem>>, vector<8x1xf32>
    tpu.vector_store %arg17[%c0_27, %c0_28], %47 {strides = array<i32>} : memref<8x1xf32, #tpu.memory_space<vmem>>, vector<8x1xf32>,
    %c1_i32 = arith.constant 1 : i32
    %49 = arith.cmpi eq, %arg1, %c1_i32 : i32
    %50 = arith.extui %49 : i1 to i32
    %c0_i32_29 = arith.constant 0 : i32
    %51 = arith.cmpi ne, %50, %c0_i32_29 : i32
    scf.if %51 {
      %c0_30 = arith.constant 0 : index
      %c0_31 = arith.constant 0 : index
      %52 = vector.load %arg15[%c0_30, %c0_31] : memref<8x1xf32, #tpu.memory_space<vmem>>, vector<8x1xf32>
      %53 = math.log %52 : vector<8x1xf32>
      %c0_32 = arith.constant 0 : index
      %c0_33 = arith.constant 0 : index
      %54 = vector.load %arg17[%c0_32, %c0_33] : memref<8x1xf32, #tpu.memory_space<vmem>>, vector<8x1xf32>
      %c0_34 = arith.constant 0 : index
      %c0_35 = arith.constant 0 : index
      %55 = vector.load %arg14[%c0_34, %c0_35] : memref<8x1xf32, #tpu.memory_space<vmem>>, vector<8x1xf32>
      %56 = arith.addf %55, %53 : vector<8x1xf32>
      %57 = arith.subf %54, %56 : vector<8x1xf32>
      %c0_36 = arith.constant 0 : index
      %c0_37 = arith.constant 0 : index
      %58 = vector.load %arg16[%c0_36, %c0_37] : memref<8x1xf32, #tpu.memory_space<vmem>>, vector<8x1xf32>
      %59 = arith.divf %58, %52 : vector<8x1xf32>
      %60 = arith.subf %53, %59 : vector<8x1xf32>
      %61 = tpu.iota {dimensions = array<i32: 1>} : vector<8x128xi32>
      %c0_i32_38 = arith.constant 0 : i32
      %62 = vector.broadcast %c0_i32_38 : i32 to vector<8x128xi32>
      %63 = arith.cmpi eq, %61, %62 : vector<8x128xi32>
      %c1_i32_39 = arith.constant 1 : i32
      %64 = vector.broadcast %c1_i32_39 : i32 to vector<8x128xi32>
      %65 = arith.cmpi eq, %61, %64 : vector<8x128xi32>
      %c2_i32 = arith.constant 2 : i32
      %66 = vector.broadcast %c2_i32 : i32 to vector<8x128xi32>
      %67 = arith.cmpi eq, %61, %66 : vector<8x128xi32>
      %c0_40 = arith.constant 0 : index
      %c0_41 = arith.constant 0 : index
      %68 = vector.load %arg18[%c0_40, %c0_41] : memref<8x1xf32, #tpu.memory_space<vmem>>, vector<8x1xf32>
      %cst_42 = arith.constant 0.000000e+00 : f32
      %69 = vector.shape_cast %68 : vector<8x1xf32> to vector<8x1xf32>
      %70 = vector.broadcast %69 : vector<8x1xf32> to vector<8x128xf32>
      %71 = vector.broadcast %cst_42 : f32 to vector<8x128xf32>
      %72 = arith.select %67, %70, %71 : vector<8x128xi1>, vector<8x128xf32>
      %73 = vector.shape_cast %60 : vector<8x1xf32> to vector<8x1xf32>
      %74 = vector.broadcast %73 : vector<8x1xf32> to vector<8x128xf32>
      %75 = arith.select %65, %74, %72 : vector<8x128xi1>, vector<8x128xf32>
      %76 = vector.shape_cast %57 : vector<8x1xf32> to vector<8x1xf32>
      %77 = vector.broadcast %76 : vector<8x1xf32> to vector<8x128xf32>
      %78 = arith.select %63, %77, %75 : vector<8x128xi1>, vector<8x128xf32>
      %c0_43 = arith.constant 0 : index
      %c0_44 = arith.constant 0 : index
      %79 = vector.load %arg12[%c0_43, %c0_44] : memref<8x128xf32, #tpu.memory_space<vmem>>, vector<8x128xf32>
      tpu.vector_store %arg12[%c0_43, %c0_44], %78 {strides = array<i32>} : memref<8x128xf32, #tpu.memory_space<vmem>>, vector<8x128xf32>,
    } else {
    }
    return
  }
  func.func @transform_0(%arg0: i32, %arg1: i32) -> (i32, i32) {
    %c0_i32 = arith.constant 0 : i32
    %c0_i32_0 = arith.constant 0 : i32
    return %arg0, %c0_i32 : i32, i32
  }
  func.func @transform_1(%arg0: i32, %arg1: i32) -> (i32, i32) {
    %c0_i32 = arith.constant 0 : i32
    %c0_i32_0 = arith.constant 0 : i32
    return %arg0, %c0_i32 : i32, i32
  }
  func.func @transform_2(%arg0: i32, %arg1: i32) -> (i32, i32) {
    %c0_i32 = arith.constant 0 : i32
    %c0_i32_0 = arith.constant 0 : i32
    %c0_i32_1 = arith.constant 0 : i32
    return %c0_i32, %c0_i32_0 : i32, i32
  }
  func.func @transform_3(%arg0: i32, %arg1: i32) -> (i32, i32) {
    %c0_i32 = arith.constant 0 : i32
    %c0_i32_0 = arith.constant 0 : i32
    %c0_i32_1 = arith.constant 0 : i32
    return %c0_i32, %c0_i32_0 : i32, i32
  }
  func.func @transform_4(%arg0: i32, %arg1: i32) -> (i32, i32) {
    %c0_i32 = arith.constant 0 : i32
    %c0_i32_0 = arith.constant 0 : i32
    return %c0_i32, %arg1 : i32, i32
  }
  func.func @transform_5(%arg0: i32, %arg1: i32) -> (i32, i32) {
    %c0_i32 = arith.constant 0 : i32
    %c0_i32_0 = arith.constant 0 : i32
    return %c0_i32, %arg1 : i32, i32
  }
  func.func @transform_6(%arg0: i32, %arg1: i32) -> (i32, i32) {
    %c0_i32 = arith.constant 0 : i32
    %c0_i32_0 = arith.constant 0 : i32
    %c0_i32_1 = arith.constant 0 : i32
    return %c0_i32, %c0_i32_0 : i32, i32
  }
  func.func @transform_7(%arg0: i32, %arg1: i32) -> (i32, i32) {
    %c0_i32 = arith.constant 0 : i32
    %c0_i32_0 = arith.constant 0 : i32
    %c0_i32_1 = arith.constant 0 : i32
    return %c0_i32, %c0_i32_0 : i32, i32
  }
  func.func @transform_8(%arg0: i32, %arg1: i32) -> (i32, i32) {
    %c0_i32 = arith.constant 0 : i32
    %c0_i32_0 = arith.constant 0 : i32
    %c0_i32_1 = arith.constant 0 : i32
    return %c0_i32, %c0_i32_0 : i32, i32
  }
  func.func @transform_9(%arg0: i32, %arg1: i32) -> (i32, i32) {
    %c0_i32 = arith.constant 0 : i32
    %c0_i32_0 = arith.constant 0 : i32
    %c0_i32_1 = arith.constant 0 : i32
    return %c0_i32, %c0_i32_0 : i32, i32
  }
  func.func @transform_10(%arg0: i32, %arg1: i32) -> (i32, i32) {
    %c0_i32 = arith.constant 0 : i32
    %c0_i32_0 = arith.constant 0 : i32
    return %arg0, %c0_i32 : i32, i32
  }
}

</mosaic_0001>

<llo_original>
// kernel: squeeze.5
$region0: #{squeeze.5}
  %s0 = inlined_call_operand.vmem [shape: f32[16], index: 0, kind: input, shape index: {}]
  %s1 = inlined_call_operand.hbm [shape: f32[2,8], index: 1, kind: output, shape index: {}]
  $region1: #{squeeze.5} parent=0
    #allocation0 [shape = 'u8[1024]{0}', space=vmem, size = 0x400, scoped, tag = 'operand span for operand 1']
    #allocation1 [shape = 's32[1]{0}', space=sflag, size = 0x4, scoped, tag = 'scoped memory for squeeze.5']
    #allocation2 [shape = 'u8[4096]{0}', space=vmem, size = 0x1000, scoped, tag = 'scoped mem for output reshape']
    #allocation3 [shape = 'u8[4096]{0}', space=vmem, size = 0x1000, scoped, tag = 'scoped mem for input reshape']
    %2 = vsyncpa [#allocation1], 0
    %s4 = ssub.s32 2, 1
    %v5 = vld [vmem:[%s0] sm:%s4]
    %6 = vst [vmem:[#allocation3] sm:%s4] %v5
    %v7 = vld [vmem:[#allocation3] sm:$0x1]
    %vm8 = vcmask 64512
    %9 = vst.msk [vmem:[#allocation2] sm:$0x1] %vm8, %v7
    %v10 = vld [vmem:[#allocation3] sm:$0x1]
    %11 = vrot.lane.b32.xlu0 %v10, 120
    %v12 = vpop.permute.xlu0 %11
    %vm13 = vcmask 64512
    %s14 = scalar_lea.vmem [#allocation2], 1
    %15 = vst.msk [vmem:[%s14] sm:$0x1] %vm13, %v12
    %s17 = ssub.s32 4, 1
    %v18 = vld [vmem:[#allocation2] sm:%s17]
    %s20 = ssub.s32 4, 1
    %21 = vst [vmem:[#allocation0] sm:%s20] %v18
    %23 = vsyncadd [#allocation1], 0
    %s25 = sshll.u32 [#allocation0], 4
    %s26 = int_to_ptr.vmem [resolvable:$true] %s25
    %s27 = sshll.u32 %s1, 4
    %s28 = int_to_ptr.hbm [resolvable:$true] %s27
    %30 = dma.vmem_to_hbm [thread:$0]  %s26, 32, %s28, [#allocation1]
    %32 = dma.done [#allocation1], 32
    %33 = vsyncpa [#allocation1], 1

// kernel: lm_multi_actor_critic_forward.1
$region0: #{lm_multi_actor_critic_forward.1}
  #allocation0 [shape = 'u32[]', space=smem, size = 0x4, offset = 0x4, fixed_abs, tag = 'smem constant byte address 0x4 - core index']
  #allocation1 [shape = 'u32[72,128]{1,0:T(1,128)}', space=vmem, size = 0x9000, scoped, tag = 'internal scratch']
  #allocation2 [shape = 'bf16[8,128]{1,0:T(8,128)(2,1)}', space=vmem, size = 0x800, scoped, tag = 'scratch operand']
  #allocation3 [shape = 'f32[8,1]{1,0:T(8,128)}', space=vmem, size = 0x1000, scoped, tag = 'scratch operand']
  #allocation4 [shape = 'f32[8,1]{1,0:T(8,128)}', space=vmem, size = 0x1000, scoped, tag = 'scratch operand']
  #allocation5 [shape = 'f32[8,1]{1,0:T(8,128)}', space=vmem, size = 0x1000, scoped, tag = 'scratch operand']
  #allocation6 [shape = 'f32[8,1]{1,0:T(8,128)}', space=vmem, size = 0x1000, scoped, tag = 'scratch operand']
  #allocation7 [shape = 'f32[8,1]{1,0:T(8,128)}', space=vmem, size = 0x1000, scoped, tag = 'scratch operand']
  #allocation8 [shape = 'f32[1,1]{1,0:T(1,128)S(1)}', space=vmem, size = 0x200, scoped, tag = 'scoped memory for lm_multi_actor_critic_forward.1']
  %s0 = inlined_call_operand.vmem [shape: bf16[16,128], index: 0, kind: input, shape index: {}]
  %s1 = inlined_call_operand.vmem [shape: s32[16,1], index: 1, kind: input, shape index: {}]
  %s2 = inlined_call_operand.vmem [shape: bf16[128,128], index: 2, kind: input, shape index: {}]
  %s3 = inlined_call_operand.vmem [shape: f32[1,128], index: 3, kind: input, shape index: {}]
  %s4 = inlined_call_operand.vmem [shape: bf16[128,256], index: 4, kind: input, shape index: {}]
  %s5 = inlined_call_operand.vmem [shape: f32[1,256], index: 5, kind: input, shape index: {}]
  %s6 = inlined_call_operand.vmem [shape: bf16[128,128], index: 6, kind: input, shape index: {}]
  %s7 = inlined_call_operand.vmem [shape: f32[1,128], index: 7, kind: input, shape index: {}]
  %s8 = inlined_call_operand.vmem [shape: f32[1,128], index: 8, kind: input, shape index: {}]
  %s9 = inlined_call_operand.<no memory space> [shape: f32[1,1], index: 9, kind: input, shape index: {}]
  %s10 = inlined_call_operand.vmem [shape: f32[16,128], index: 10, kind: output, shape index: {}]
  %s11 = sld [smem:[#allocation0]]
  $region122: #{lm_multi_actor_critic_forward.1} parent=0
    _
  %s13 = ssub.s32 1, %s11
  %s14 = scalar_select 0, %s13, %s11
  %v15 = vstv %s9
  %16 = vst [vmem:[#allocation8] sm:$0x1] %v15
  $region1: #{lm_multi_actor_critic_forward.1} parent=0
    #allocation9 [shape = 'u8[65536]{0}', space=vmem, size = 0x10000, scoped, tag = 'input window, operand 4']
    loop: start=0, step=1, limit=6
    $region2: #{lm_multi_actor_critic_forward.1} parent=1 // loop_pre_header
      _
    $region3: #{lm_multi_actor_critic_forward.1} parent=1 // loop_header
      %s18 = sphi 0, %s22
      %p19 = scmp.ge.s32.totalorder %s18, 6
      %s25 = sphi 0, %s37
      %s26 = sphi 0, %s33
      %s27 = sphi 0, %s25
      %s28 = sphi 0, %s26
      %s29 = sphi 0, %s27
      %s30 = sphi 0, %s28
      %s40 = sphi 0, %s42
      %s43 = sphi 0, %s40
      %s44 = sphi 0, %s43
      %s60 = sphi 0, %s44
      %s66 = sphi 0, %s68
      %s69 = sphi 0, %s66
      %s70 = sphi 0, %s69
      %s86 = sphi 0, %s70
      %s90 = sphi 0, %s90
      %s92 = sphi 0, %s90
      %s93 = sphi 0, %s92
      %s107 = sphi 0, %s93
      %s111 = sphi 0, %s111
      %s113 = sphi 0, %s111
      %s114 = sphi 0, %s113
      %s128 = sphi 0, %s114
      %s134 = sphi 0, %s136
      %s137 = sphi 0, %s134
      %s138 = sphi 0, %s137
      %s154 = sphi 0, %s138
      %s160 = sphi 0, %s162
      %s163 = sphi 0, %s160
      %s164 = sphi 0, %s163
      %s180 = sphi 0, %s164
      %s184 = sphi 0, %s184
      %s186 = sphi 0, %s184
      %s187 = sphi 0, %s186
      %s201 = sphi 0, %s187
      %s205 = sphi 0, %s205
      %s207 = sphi 0, %s205
      %s208 = sphi 0, %s207
      %s222 = sphi 0, %s208
      %s226 = sphi 0, %s226
      %s228 = sphi 0, %s226
      %s229 = sphi 0, %s228
      %s243 = sphi 0, %s229
      %s247 = sphi 0, %s247
      %s249 = sphi 0, %s247
      %s250 = sphi 0, %s249
      %s264 = sphi 0, %s250
      %s270 = sphi 0, %s272
      %s273 = sphi 0, %s270
      %s274 = sphi 0, %s273
      %s290 = sphi 0, %s274
    $region4: #{lm_multi_actor_critic_forward.1} parent=1 // loop_header_branch
      %21 = sbr.rel (%p19) target = $region8
    $region5: #{lm_multi_actor_critic_forward.1} parent=1 // loop_body
      %s23 = ssub.s32 %s18, 1
      %s24 = ssub.s32 %s18, 2
      %s31 = sadd.s32 1, %s26
      %p32 = scmp.ge.s32.totalorder %s31, 2
      %s33 = scalar_select %p32, 0, %s31
      %s34 = sadd.s32 1, %s25
      %s35 = scalar_select %p32, %s34, %s25
      %p36 = scmp.ge.s32.totalorder %s35, 2
      %s37 = scalar_select %p36, 0, %s35
      %s38 = ssub.s32 %s25, %s37
      %p39 = scmp.eq.s32.totalorder %s38, 0
      %s41 = sadd.s32 %s40, 1
      %s42 = scalar_select %p39, %s40, %s41
      %p45 = pneg %p39
      %p46 = scmp.eq.s32.totalorder %s18, 3
      %p47 = por %p45, %p46
      %p48 = scmp.ne.s32.totalorder %s40, %s43
      %p49 = scmp.eq.s32.totalorder %s18, 0
      %p50 = por %p48, %p49
      %p51 = scmp.ne.s32.totalorder %s40, %s43
      %p52 = scmp.eq.s32.totalorder %s23, 3
      %p53 = por %p51, %p52
      %p54 = scmp.ne.s32.totalorder %s43, %s44
      %p55 = scmp.eq.s32.totalorder %s23, 0
      %p56 = por %p54, %p55
      %p57 = scmp.ne.s32.totalorder %s43, %s44
      %p58 = scmp.eq.s32.totalorder %s24, 3
      %p59 = por %p57, %p58
      %p61 = scmp.ne.s32.totalorder %s44, %s60
      %p62 = scmp.eq.s32.totalorder %s24, 0
      %p63 = por %p61, %p62
      %s64 = ssub.s32 %s25, %s37
      %p65 = scmp.eq.s32.totalorder %s64, 0
      %s67 = sadd.s32 %s66, 1
      %s68 = scalar_select %p65, %s66, %s67
      %p71 = pneg %p65
      %p72 = scmp.eq.s32.totalorder %s18, 3
      %p73 = por %p71, %p72
      %p74 = scmp.ne.s32.totalorder %s66, %s69
      %p75 = scmp.eq.s32.totalorder %s18, 0
      %p76 = por %p74, %p75
      %p77 = scmp.ne.s32.totalorder %s66, %s69
      %p78 = scmp.eq.s32.totalorder %s23, 3
      %p79 = por %p77, %p78
      %p80 = scmp.ne.s32.totalorder %s69, %s70
      %p81 = scmp.eq.s32.totalorder %s23, 0
      %p82 = por %p80, %p81
      %p83 = scmp.ne.s32.totalorder %s69, %s70
      %p84 = scmp.eq.s32.totalorder %s24, 3
      %p85 = por %p83, %p84
      %p87 = scmp.ne.s32.totalorder %s70, %s86
      %p88 = scmp.eq.s32.totalorder %s24, 0
      %p89 = por %p87, %p88
      %s91 = sadd.s32 %s90, 1
      %p94 = scmp.eq.s32.totalorder %s18, 3
      %p95 = scmp.ne.s32.totalorder %s90, %s92
      %p96 = scmp.eq.s32.totalorder %s18, 0
      %p97 = por %p95, %p96
      %p98 = scmp.ne.s32.totalorder %s90, %s92
      %p99 = scmp.eq.s32.totalorder %s23, 3
      %p100 = por %p98, %p99
      %p101 = scmp.ne.s32.totalorder %s92, %s93
      %p102 = scmp.eq.s32.totalorder %s23, 0
      %p103 = por %p101, %p102
      %p104 = scmp.ne.s32.totalorder %s92, %s93
      %p105 = scmp.eq.s32.totalorder %s24, 3
      %p106 = por %p104, %p105
      %p108 = scmp.ne.s32.totalorder %s93, %s107
      %p109 = scmp.eq.s32.totalorder %s24, 0
      %p110 = por %p108, %p109
      %s112 = sadd.s32 %s111, 1
      %p115 = scmp.eq.s32.totalorder %s18, 3
      %p116 = scmp.ne.s32.totalorder %s111, %s113
      %p117 = scmp.eq.s32.totalorder %s18, 0
      %p118 = por %p116, %p117
      %p119 = scmp.ne.s32.totalorder %s111, %s113
      %p120 = scmp.eq.s32.totalorder %s23, 3
      %p121 = por %p119, %p120
      %p122 = scmp.ne.s32.totalorder %s113, %s114
      %p123 = scmp.eq.s32.totalorder %s23, 0
      %p124 = por %p122, %p123
      %p125 = scmp.ne.s32.totalorder %s113, %s114
      %p126 = scmp.eq.s32.totalorder %s24, 3
      %p127 = por %p125, %p126
      %p129 = scmp.ne.s32.totalorder %s114, %s128
      %p130 = scmp.eq.s32.totalorder %s24, 0
      %p131 = por %p129, %p130
      %s132 = ssub.s32 %s26, %s33
      %p133 = scmp.eq.s32.totalorder %s132, 0
      %s135 = sadd.s32 %s134, 1
      %s136 = scalar_select %p133, %s134, %s135
      %p139 = pneg %p133
      %p140 = scmp.eq.s32.totalorder %s18, 3
      %p141 = por %p139, %p140
      %p142 = scmp.ne.s32.totalorder %s134, %s137
      %p143 = scmp.eq.s32.totalorder %s18, 0
      %p144 = por %p142, %p143
      %p145 = scmp.ne.s32.totalorder %s134, %s137
      %p146 = scmp.eq.s32.totalorder %s23, 3
      %p147 = por %p145, %p146
      %p148 = scmp.ne.s32.totalorder %s137, %s138
      %p149 = scmp.eq.s32.totalorder %s23, 0
      %p150 = por %p148, %p149
      %p151 = scmp.ne.s32.totalorder %s137, %s138
      %p152 = scmp.eq.s32.totalorder %s24, 3
      %p153 = por %p151, %p152
      %p155 = scmp.ne.s32.totalorder %s138, %s154
      %p156 = scmp.eq.s32.totalorder %s24, 0
      %p157 = por %p155, %p156
      %s158 = ssub.s32 %s26, %s33
      %p159 = scmp.eq.s32.totalorder %s158, 0
      %s161 = sadd.s32 %s160, 1
      %s162 = scalar_select %p159, %s160, %s161
      %p165 = pneg %p159
      %p166 = scmp.eq.s32.totalorder %s18, 3
      %p167 = por %p165, %p166
      %p168 = scmp.ne.s32.totalorder %s160, %s163
      %p169 = scmp.eq.s32.totalorder %s18, 0
      %p170 = por %p168, %p169
      %p171 = scmp.ne.s32.totalorder %s160, %s163
      %p172 = scmp.eq.s32.totalorder %s23, 3
      %p173 = por %p171, %p172
      %p174 = scmp.ne.s32.totalorder %s163, %s164
      %p175 = scmp.eq.s32.totalorder %s23, 0
      %p176 = por %p174, %p175
      %p177 = scmp.ne.s32.totalorder %s163, %s164
      %p178 = scmp.eq.s32.totalorder %s24, 3
      %p179 = por %p177, %p178
      %p181 = scmp.ne.s32.totalorder %s164, %s180
      %p182 = scmp.eq.s32.totalorder %s24, 0
      %p183 = por %p181, %p182
      %s185 = sadd.s32 %s184, 1
      %p188 = scmp.eq.s32.totalorder %s18, 3
      %p189 = scmp.ne.s32.totalorder %s184, %s186
      %p190 = scmp.eq.s32.totalorder %s18, 0
      %p191 = por %p189, %p190
      %p192 = scmp.ne.s32.totalorder %s184, %s186
      %p193 = scmp.eq.s32.totalorder %s23, 3
      %p194 = por %p192, %p193
      %p195 = scmp.ne.s32.totalorder %s186, %s187
      %p196 = scmp.eq.s32.totalorder %s23, 0
      %p197 = por %p195, %p196
      %p198 = scmp.ne.s32.totalorder %s186, %s187
      %p199 = scmp.eq.s32.totalorder %s24, 3
      %p200 = por %p198, %p199
      %p202 = scmp.ne.s32.totalorder %s187, %s201
      %p203 = scmp.eq.s32.totalorder %s24, 0
      %p204 = por %p202, %p203
      %s206 = sadd.s32 %s205, 1
      %p209 = scmp.eq.s32.totalorder %s18, 3
      %p210 = scmp.ne.s32.totalorder %s205, %s207
      %p211 = scmp.eq.s32.totalorder %s18, 0
      %p212 = por %p210, %p211
      %p213 = scmp.ne.s32.totalorder %s205, %s207
      %p214 = scmp.eq.s32.totalorder %s23, 3
      %p215 = por %p213, %p214
      %p216 = scmp.ne.s32.totalorder %s207, %s208
      %p217 = scmp.eq.s32.totalorder %s23, 0
      %p218 = por %p216, %p217
      %p219 = scmp.ne.s32.totalorder %s207, %s208
      %p220 = scmp.eq.s32.totalorder %s24, 3
      %p221 = por %p219, %p220
      %p223 = scmp.ne.s32.totalorder %s208, %s222
      %p224 = scmp.eq.s32.totalorder %s24, 0
      %p225 = por %p223, %p224
      %s227 = sadd.s32 %s226, 1
      %p230 = scmp.eq.s32.totalorder %s18, 3
      %p231 = scmp.ne.s32.totalorder %s226, %s228
      %p232 = scmp.eq.s32.totalorder %s18, 0
      %p233 = por %p231, %p232
      %p234 = scmp.ne.s32.totalorder %s226, %s228
      %p235 = scmp.eq.s32.totalorder %s23, 3
      %p236 = por %p234, %p235
      %p237 = scmp.ne.s32.totalorder %s228, %s229
      %p238 = scmp.eq.s32.totalorder %s23, 0
      %p239 = por %p237, %p238
      %p240 = scmp.ne.s32.totalorder %s228, %s229
      %p241 = scmp.eq.s32.totalorder %s24, 3
      %p242 = por %p240, %p241
      %p244 = scmp.ne.s32.totalorder %s229, %s243
      %p245 = scmp.eq.s32.totalorder %s24, 0
      %p246 = por %p244, %p245
      %s248 = sadd.s32 %s247, 1
      %p251 = scmp.eq.s32.totalorder %s18, 3
      %p252 = scmp.ne.s32.totalorder %s247, %s249
      %p253 = scmp.eq.s32.totalorder %s18, 0
      %p254 = por %p252, %p253
      %p255 = scmp.ne.s32.totalorder %s247, %s249
      %p256 = scmp.eq.s32.totalorder %s23, 3
      %p257 = por %p255, %p256
      %p258 = scmp.ne.s32.totalorder %s249, %s250
      %p259 = scmp.eq.s32.totalorder %s23, 0
      %p260 = por %p258, %p259
      %p261 = scmp.ne.s32.totalorder %s249, %s250
      %p262 = scmp.eq.s32.totalorder %s24, 3
      %p263 = por %p261, %p262
      %p265 = scmp.ne.s32.totalorder %s250, %s264
      %p266 = scmp.eq.s32.totalorder %s24, 0
      %p267 = por %p265, %p266
      %s268 = ssub.s32 %s25, %s37
      %p269 = scmp.eq.s32.totalorder %s268, 0
      %s271 = sadd.s32 %s270, 1
      %s272 = scalar_select %p269, %s270, %s271
      %p275 = pneg %p269
      %p276 = scmp.eq.s32.totalorder %s18, 3
      %p277 = por %p275, %p276
      %p278 = scmp.ne.s32.totalorder %s270, %s273
      %p279 = scmp.eq.s32.totalorder %s18, 0
      %p280 = por %p278, %p279
      %p281 = scmp.ne.s32.totalorder %s270, %s273
      %p282 = scmp.eq.s32.totalorder %s23, 3
      %p283 = por %p281, %p282
      %p284 = scmp.ne.s32.totalorder %s273, %s274
      %p285 = scmp.eq.s32.totalorder %s23, 0
      %p286 = por %p284, %p285
      %p287 = scmp.ne.s32.totalorder %s273, %s274
      %p288 = scmp.eq.s32.totalorder %s24, 3
      %p289 = por %p287, %p288
      %p291 = scmp.ne.s32.totalorder %s274, %s290
      %p292 = scmp.eq.s32.totalorder %s24, 0
      %p293 = por %p291, %p292
      %p294 = scmp.le.s32.totalorder 1, %s18
      %p295 = scmp.lt.s32.totalorder %s18, 5
      %p296 = pnand %p294, %p295
      %p297 = pneg %p296
      // Predicated region
      $region9: #{lm_multi_actor_critic_forward.1} parent=5 // pred_check
        _
      $region10: #{lm_multi_actor_critic_forward.1} parent=5 // pred_check_branch
        %299 = sbr.rel (%p296) target = $region12
      $region11: #{lm_multi_actor_critic_forward.1} parent=5 // pred_region
        %s300 = ssub.s32 %s18, 1
        // Predicated region
        $region13: #{lm_multi_actor_critic_forward.1} parent=11 // pred_check
          %p301 = pneg %p103
        $region14: #{lm_multi_actor_critic_forward.1} parent=11 // pred_check_branch
          %303 = sbr.rel (%p301) target = $region16
        $region15: #{lm_multi_actor_critic_forward.1} parent=11 // pred_region
          _
        $region16: #{lm_multi_actor_critic_forward.1} parent=11 // pred_fallthru
          _
        // Predicated region
        $region17: #{lm_multi_actor_critic_forward.1} parent=11 // pred_check
          %p304 = pneg %p124
        $region18: #{lm_multi_actor_critic_forward.1} parent=11 // pred_check_branch
          %306 = sbr.rel (%p304) target = $region20
        $region19: #{lm_multi_actor_critic_forward.1} parent=11 // pred_region
          _
        $region20: #{lm_multi_actor_critic_forward.1} parent=11 // pred_fallthru
          _
        // Predicated region
        $region21: #{lm_multi_actor_critic_forward.1} parent=11 // pred_check
          %p307 = pneg %p197
        $region22: #{lm_multi_actor_critic_forward.1} parent=11 // pred_check_branch
          %309 = sbr.rel (%p307) target = $region24
        $region23: #{lm_multi_actor_critic_forward.1} parent=11 // pred_region
          _
        $region24: #{lm_multi_actor_critic_forward.1} parent=11 // pred_fallthru
          _
        // Predicated region
        $region25: #{lm_multi_actor_critic_forward.1} parent=11 // pred_check
          %p310 = pneg %p218
        $region26: #{lm_multi_actor_critic_forward.1} parent=11 // pred_check_branch
          %312 = sbr.rel (%p310) target = $region28
        $region27: #{lm_multi_actor_critic_forward.1} parent=11 // pred_region
          _
        $region28: #{lm_multi_actor_critic_forward.1} parent=11 // pred_fallthru
          _
        // Predicated region
        $region29: #{lm_multi_actor_critic_forward.1} parent=11 // pred_check
          %p313 = pneg %p239
        $region30: #{lm_multi_actor_critic_forward.1} parent=11 // pred_check_branch
          %315 = sbr.rel (%p313) target = $region32
        $region31: #{lm_multi_actor_critic_forward.1} parent=11 // pred_region
          _
        $region32: #{lm_multi_actor_critic_forward.1} parent=11 // pred_fallthru
          _
        // Predicated region
        $region33: #{lm_multi_actor_critic_forward.1} parent=11 // pred_check
          %p316 = pneg %p260
        $region34: #{lm_multi_actor_critic_forward.1} parent=11 // pred_check_branch
          %318 = sbr.rel (%p316) target = $region36
        $region35: #{lm_multi_actor_critic_forward.1} parent=11 // pred_region
          _
        $region36: #{lm_multi_actor_critic_forward.1} parent=11 // pred_fallthru
          _
      $region12: #{lm_multi_actor_critic_forward.1} parent=5 // pred_fallthru
        _
      %p319 = scmp.lt.s32.totalorder %s18, 4
      // Predicated region
      $region37: #{lm_multi_actor_critic_forward.1} parent=5 // pred_check
        %p320 = pneg %p319
      $region38: #{lm_multi_actor_critic_forward.1} parent=5 // pred_check_branch
        %322 = sbr.rel (%p320) target = $region40
      $region39: #{lm_multi_actor_critic_forward.1} parent=5 // pred_region
        // Predicated region
        $region41: #{lm_multi_actor_critic_forward.1} parent=39 // pred_check
          %p323 = pneg %p50
        $region42: #{lm_multi_actor_critic_forward.1} parent=39 // pred_check_branch
          %325 = sbr.rel (%p323) target = $region44
        $region43: #{lm_multi_actor_critic_forward.1} parent=39 // pred_region
          %p326 = scmp.lt.s32.totalorder %s25, 1
          %s327 = scalar_select %p326, %s25, 1
          %s328 = smul.addr %s327, 4
          %s329 = scalar_lea.vmem %s0, %s328
        $region44: #{lm_multi_actor_critic_forward.1} parent=39 // pred_fallthru
          _
        // Predicated region
        $region45: #{lm_multi_actor_critic_forward.1} parent=39 // pred_check
          %p330 = pneg %p76
        $region46: #{lm_multi_actor_critic_forward.1} parent=39 // pred_check_branch
          %332 = sbr.rel (%p330) target = $region48
        $region47: #{lm_multi_actor_critic_forward.1} parent=39 // pred_region
          %p333 = scmp.lt.s32.totalorder %s25, 1
          %s334 = scalar_select %p333, %s25, 1
          %s335 = smul.addr %s334, 8
          %s336 = scalar_lea.vmem %s1, %s335
        $region48: #{lm_multi_actor_critic_forward.1} parent=39 // pred_fallthru
          _
        // Predicated region
        $region49: #{lm_multi_actor_critic_forward.1} parent=39 // pred_check
          %p337 = pneg %p144
        $region50: #{lm_multi_actor_critic_forward.1} parent=39 // pred_check_branch
          %339 = sbr.rel (%p337) target = $region52
        $region51: #{lm_multi_actor_critic_forward.1} parent=39 // pred_region
          %s340 = sand.u32 %s134, 1
          %s341 = sand.u32 %s134, 1
          %s342 = smul.addr %s341, 64
          %s343 = scalar_lea.vmem [#allocation9], %s342
          %s344 = smul.addr %s26, 4
          %s345 = scalar_lea.vmem %s4, %s344
          // Predicated region
          $region53: #{lm_multi_actor_critic_forward.1} parent=51 // pred_check
            _
          $region54: #{lm_multi_actor_critic_forward.1} parent=51 // pred_check_branch
            %347 = sbr.rel (0) target = $region56
          $region55: #{lm_multi_actor_critic_forward.1} parent=51 // pred_region
            // Predicated region
            $region57: #{lm_multi_actor_critic_forward.1} parent=55 // pred_check
              _
            $region58: #{lm_multi_actor_critic_forward.1} parent=55 // pred_check_branch
              %349 = sbr.rel target = $region60
            $region59: #{lm_multi_actor_critic_forward.1} parent=55 // pred_region
              // Predicated region
              $region72: #{lm_multi_actor_critic_forward.1} parent=59 // pred_check
                _
              $region73: #{lm_multi_actor_critic_forward.1} parent=59 // pred_check_branch
                %395 = sbr.rel (0) target = $region75
              $region74: #{lm_multi_actor_critic_forward.1} parent=59 // pred_region
                loop: start=0, step=1, limit=1
                $region76: #{lm_multi_actor_critic_forward.1} parent=74 // loop_pre_header
                  _
                $region77: #{lm_multi_actor_critic_forward.1} parent=74 // loop_header
                  %s397 = sphi 0, %s401
                  %p398 = scmp.ge.s32.totalorder %s397, 1
                  %s402 = sphi %s345, %s345
                  %s403 = sphi %s343, %s343
                $region78: #{lm_multi_actor_critic_forward.1} parent=74 // loop_header_branch
                  %400 = sbr.rel (%p398) target = $region82
                $region79: #{lm_multi_actor_critic_forward.1} parent=74 // loop_body
                  _
                $region80: #{lm_multi_actor_critic_forward.1} parent=74 // loop_footer
                  %s401 = sadd.s32 1, %s397
                $region81: #{lm_multi_actor_critic_forward.1} parent=74 // loop_footer_branch
                  %396 = sbr.rel target = $region77
                $region82: #{lm_multi_actor_critic_forward.1} parent=74 // loop_exit
                  _
                %s405 = ssub.s32 16, 1
                loop: start=0, step=1, limit=1
                $region83: #{lm_multi_actor_critic_forward.1} parent=74 // loop_pre_header
                  _
                $region84: #{lm_multi_actor_critic_forward.1} parent=74 // loop_header
                  %s407 = sphi 0, %s411
                  %p408 = scmp.ge.s32.totalorder %s407, 1
                  %s412 = sphi %s345, %s345
                  %s413 = sphi %s343, %s343
                $region85: #{lm_multi_actor_critic_forward.1} parent=74 // loop_header_branch
                  %410 = sbr.rel (%p408) target = $region89
                $region86: #{lm_multi_actor_critic_forward.1} parent=74 // loop_body
                  %v414 = vld [vmem:[%s412] sm:%s405]
                  %415 = vst [vmem:[%s413] sm:%s405] %v414
                  %v416 = vld [vmem:[%s412 + $0x8] sm:%s405]
                  %417 = vst [vmem:[%s413 + $0x4] sm:%s405] %v416
                  %v418 = vld [vmem:[%s412 + $0x10] sm:%s405]
                  %419 = vst [vmem:[%s413 + $0x8] sm:%s405] %v418
                  %v420 = vld [vmem:[%s412 + $0x18] sm:%s405]
                  %421 = vst [vmem:[%s413 + $0xc] sm:%s405] %v420
                  %v422 = vld [vmem:[%s412 + $0x20] sm:%s405]
                  %423 = vst [vmem:[%s413 + $0x10] sm:%s405] %v422
                  %v424 = vld [vmem:[%s412 + $0x28] sm:%s405]
                  %425 = vst [vmem:[%s413 + $0x14] sm:%s405] %v424
                  %v426 = vld [vmem:[%s412 + $0x30] sm:%s405]
                  %427 = vst [vmem:[%s413 + $0x18] sm:%s405] %v426
                  %v428 = vld [vmem:[%s412 + $0x38] sm:%s405]
                  %429 = vst [vmem:[%s413 + $0x1c] sm:%s405] %v428
                  %v430 = vld [vmem:[%s412 + $0x40] sm:%s405]
                  %431 = vst [vmem:[%s413 + $0x20] sm:%s405] %v430
                  %v432 = vld [vmem:[%s412 + $0x48] sm:%s405]
                  %433 = vst [vmem:[%s413 + $0x24] sm:%s405] %v432
                  %v434 = vld [vmem:[%s412 + $0x50] sm:%s405]
                  %435 = vst [vmem:[%s413 + $0x28] sm:%s405] %v434
                  %v436 = vld [vmem:[%s412 + $0x58] sm:%s405]
                  %437 = vst [vmem:[%s413 + $0x2c] sm:%s405] %v436
                  %v438 = vld [vmem:[%s412 + $0x60] sm:%s405]
                  %439 = vst [vmem:[%s413 + $0x30] sm:%s405] %v438
                  %v440 = vld [vmem:[%s412 + $0x68] sm:%s405]
                  %441 = vst [vmem:[%s413 + $0x34] sm:%s405] %v440
                  %v442 = vld [vmem:[%s412 + $0x70] sm:%s405]
                  %443 = vst [vmem:[%s413 + $0x38] sm:%s405] %v442
                  %v444 = vld [vmem:[%s412 + $0x78] sm:%s405]
                  %445 = vst [vmem:[%s413 + $0x3c] sm:%s405] %v444
                $region87: #{lm_multi_actor_critic_forward.1} parent=74 // loop_footer
                  %s411 = sadd.s32 1, %s407
                $region88: #{lm_multi_actor_critic_forward.1} parent=74 // loop_footer_branch
                  %406 = sbr.rel target = $region84
                $region89: #{lm_multi_actor_critic_forward.1} parent=74 // loop_exit
                  _
              $region75: #{lm_multi_actor_critic_forward.1} parent=59 // pred_fallthru
                _
            $region60: #{lm_multi_actor_critic_forward.1} parent=55 // pred_fallthru
              _
            // Predicated region
            $region61: #{lm_multi_actor_critic_forward.1} parent=55 // pred_check
              _
            $region62: #{lm_multi_actor_critic_forward.1} parent=55 // pred_check_branch
              %351 = sbr.rel (0) target = $region64
            $region63: #{lm_multi_actor_critic_forward.1} parent=55 // pred_region
              %s353 = ssub.s32 16, 1
              loop: start=0, step=1, limit=1
              $region65: #{lm_multi_actor_critic_forward.1} parent=63 // loop_pre_header
                _
              $region66: #{lm_multi_actor_critic_forward.1} parent=63 // loop_header
                %s355 = sphi 0, %s359
                %p356 = scmp.ge.s32.totalorder %s355, 1
                %s360 = sphi %s345, %s345
                %s361 = sphi %s343, %s343
              $region67: #{lm_multi_actor_critic_forward.1} parent=63 // loop_header_branch
                %358 = sbr.rel (%p356) target = $region71
              $region68: #{lm_multi_actor_critic_forward.1} parent=63 // loop_body
                %v362 = vld [vmem:[%s360] sm:%s353]
                %363 = vst [vmem:[%s361] sm:%s353] %v362
                %v364 = vld [vmem:[%s360 + $0x8] sm:%s353]
                %365 = vst [vmem:[%s361 + $0x4] sm:%s353] %v364
                %v366 = vld [vmem:[%s360 + $0x10] sm:%s353]
                %367 = vst [vmem:[%s361 + $0x8] sm:%s353] %v366
                %v368 = vld [vmem:[%s360 + $0x18] sm:%s353]
                %369 = vst [vmem:[%s361 + $0xc] sm:%s353] %v368
                %v370 = vld [vmem:[%s360 + $0x20] sm:%s353]
                %371 = vst [vmem:[%s361 + $0x10] sm:%s353] %v370
                %v372 = vld [vmem:[%s360 + $0x28] sm:%s353]
                %373 = vst [vmem:[%s361 + $0x14] sm:%s353] %v372
                %v374 = vld [vmem:[%s360 + $0x30] sm:%s353]
                %375 = vst [vmem:[%s361 + $0x18] sm:%s353] %v374
                %v376 = vld [vmem:[%s360 + $0x38] sm:%s353]
                %377 = vst [vmem:[%s361 + $0x1c] sm:%s353] %v376
                %v378 = vld [vmem:[%s360 + $0x40] sm:%s353]
                %379 = vst [vmem:[%s361 + $0x20] sm:%s353] %v378
                %v380 = vld [vmem:[%s360 + $0x48] sm:%s353]
                %381 = vst [vmem:[%s361 + $0x24] sm:%s353] %v380
                %v382 = vld [vmem:[%s360 + $0x50] sm:%s353]
                %383 = vst [vmem:[%s361 + $0x28] sm:%s353] %v382
                %v384 = vld [vmem:[%s360 + $0x58] sm:%s353]
                %385 = vst [vmem:[%s361 + $0x2c] sm:%s353] %v384
                %v386 = vld [vmem:[%s360 + $0x60] sm:%s353]
                %387 = vst [vmem:[%s361 + $0x30] sm:%s353] %v386
                %v388 = vld [vmem:[%s360 + $0x68] sm:%s353]
                %389 = vst [vmem:[%s361 + $0x34] sm:%s353] %v388
                %v390 = vld [vmem:[%s360 + $0x70] sm:%s353]
                %391 = vst [vmem:[%s361 + $0x38] sm:%s353] %v390
                %v392 = vld [vmem:[%s360 + $0x78] sm:%s353]
                %393 = vst [vmem:[%s361 + $0x3c] sm:%s353] %v392
              $region69: #{lm_multi_actor_critic_forward.1} parent=63 // loop_footer
                %s359 = sadd.s32 1, %s355
              $region70: #{lm_multi_actor_critic_forward.1} parent=63 // loop_footer_branch
                %354 = sbr.rel target = $region66
              $region71: #{lm_multi_actor_critic_forward.1} parent=63 // loop_exit
                _
            $region64: #{lm_multi_actor_critic_forward.1} parent=55 // pred_fallthru
              _
          $region56: #{lm_multi_actor_critic_forward.1} parent=51 // pred_fallthru
            _
          %446 = vnop
        $region52: #{lm_multi_actor_critic_forward.1} parent=39 // pred_fallthru
          _
        // Predicated region
        $region90: #{lm_multi_actor_critic_forward.1} parent=39 // pred_check
          %p447 = pneg %p170
        $region91: #{lm_multi_actor_critic_forward.1} parent=39 // pred_check_branch
          %449 = sbr.rel (%p447) target = $region93
        $region92: #{lm_multi_actor_critic_forward.1} parent=39 // pred_region
          %p450 = scmp.lt.s32.totalorder %s26, 1
          %s451 = scalar_select %p450, %s26, 1
          %s452 = scalar_lea.vmem %s5, %s451
        $region93: #{lm_multi_actor_critic_forward.1} parent=39 // pred_fallthru
          _
      $region40: #{lm_multi_actor_critic_forward.1} parent=5 // pred_fallthru
        _
      %p453 = scmp.le.s32.totalorder 1, %s18
      %p454 = scmp.lt.s32.totalorder %s18, 5
      %p455 = pnand %p453, %p454
      %p456 = pneg %p455
      // Predicated region
      $region94: #{lm_multi_actor_critic_forward.1} parent=5 // pred_check
        _
      $region95: #{lm_multi_actor_critic_forward.1} parent=5 // pred_check_branch
        %458 = sbr.rel (%p455) target = $region97
      $region96: #{lm_multi_actor_critic_forward.1} parent=5 // pred_region
        %s459 = ssub.s32 %s18, 1
        %s460 = sand.u32 %s137, 1
        %s461 = sand.u32 %s137, 1
        %s462 = smul.addr %s461, 64
        %s463 = scalar_lea.vmem [#allocation9], %s462
        // Predicated region
        $region98: #{lm_multi_actor_critic_forward.1} parent=96 // pred_check
          %p464 = pneg %p150
        $region99: #{lm_multi_actor_critic_forward.1} parent=96 // pred_check_branch
          %466 = sbr.rel (%p464) target = $region101
        $region100: #{lm_multi_actor_critic_forward.1} parent=96 // pred_region
          _
        $region101: #{lm_multi_actor_critic_forward.1} parent=96 // pred_fallthru
          _
        %p467 = scmp.lt.s32.totalorder %s27, 1
        %s468 = scalar_select %p467, %s27, 1
        %s469 = smul.addr %s468, 4
        %s470 = scalar_lea.vmem %s0, %s469
        %p471 = pneg %p56
        %p472 = pneg %p53
        %p473 = scmp.lt.s32.totalorder %s27, 1
        %s474 = scalar_select %p473, %s27, 1
        %s475 = smul.addr %s474, 8
        %s476 = scalar_lea.vmem %s1, %s475
        %p477 = pneg %p82
        %p478 = pneg %p79
        %p479 = pneg %p103
        %p480 = pneg %p100
        %p481 = pneg %p124
        %p482 = pneg %p121
        %s483 = sand.u32 %s137, 1
        %s484 = sand.u32 %s137, 1
        %s485 = smul.addr %s484, 64
        %s486 = scalar_lea.vmem [#allocation9], %s485
        %p487 = pneg %p150
        %p488 = pneg %p147
        %p489 = scmp.lt.s32.totalorder %s28, 1
        %s490 = scalar_select %p489, %s28, 1
        %s491 = scalar_lea.vmem %s5, %s490
        %p492 = pneg %p176
        %p493 = pneg %p173
        %p494 = pneg %p197
        %p495 = pneg %p194
        %p496 = pneg %p218
        %p497 = pneg %p215
        %p498 = pneg %p239
        %p499 = pneg %p236
        %p500 = pneg %p260
        %p501 = pneg %p257
        %p502 = pneg %p286
        %p503 = pneg %p283
        %p504 = scmp.lt.s32.totalorder %s27, 1
        %s505 = scalar_select %p504, %s27, 1
        %s506 = smul.addr %s505, 8
        %s507 = scalar_lea.vmem %s10, %s506
        %p508 = scmp.lt.s32.totalorder %s27, 1
        %s509 = scalar_select %p508, %s27, 1
        %s510 = smul.addr %s509, 4
        %s511 = scalar_lea.vmem %s0, %s510
        %p512 = scmp.lt.s32.totalorder %s27, 1
        %s513 = scalar_select %p512, %s27, 1
        %s514 = smul.addr %s513, 8
        %s515 = scalar_lea.vmem %s1, %s514
        %p516 = scmp.lt.s32.totalorder %s28, 1
        %s517 = scalar_select %p516, %s28, 1
        %s518 = scalar_lea.vmem %s5, %s517
        %p519 = scmp.lt.s32.totalorder %s27, 1
        %s520 = scalar_select %p519, %s27, 1
        %s521 = smul.addr %s520, 8
        %s522 = scalar_lea.vmem %s10, %s521
        %p523 = scmp.eq.s32.totalorder %s28, 0
        // Predicated region
        $region102: #{lm_multi_actor_critic_forward.1} parent=96 // pred_check
          %p524 = pneg %p523
        $region103: #{lm_multi_actor_critic_forward.1} parent=96 // pred_check_branch
          %526 = sbr.rel (%p524) target = $region105
        $region104: #{lm_multi_actor_critic_forward.1} parent=96 // pred_region
          %v527 = vld [vmem:[%s511] sm:$0xf]
          %v528 = vld [vmem:[%s2] sm:$0xf]
          %v529 = vld [vmem:[%s2 + $0x4] sm:$0xf]
          %v530 = vld [vmem:[%s2 + $0x8] sm:$0xf]
          %v531 = vld [vmem:[%s2 + $0xc] sm:$0xf]
          %v532 = vld [vmem:[%s2 + $0x10] sm:$0xf]
          %v533 = vld [vmem:[%s2 + $0x14] sm:$0xf]
          %v534 = vld [vmem:[%s2 + $0x18] sm:$0xf]
          %v535 = vld [vmem:[%s2 + $0x1c] sm:$0xf]
          %v536 = vld [vmem:[%s2 + $0x20] sm:$0xf]
          %v537 = vld [vmem:[%s2 + $0x24] sm:$0xf]
          %v538 = vld [vmem:[%s2 + $0x28] sm:$0xf]
          %v539 = vld [vmem:[%s2 + $0x2c] sm:$0xf]
          %v540 = vld [vmem:[%s2 + $0x30] sm:$0xf]
          %v541 = vld [vmem:[%s2 + $0x34] sm:$0xf]
          %v542 = vld [vmem:[%s2 + $0x38] sm:$0xf]
          %v543 = vld [vmem:[%s2 + $0x3c] sm:$0xf]
          %v544 = vld [vmem:[%s3] sm:$0x1]
          %v546 = vperm.slane %v544, 0
          %v564 = vunpack.c.l.b16 %v528
          %v565 = vunpack.c.l.b16 %v529
          %v566 = vunpack.c.l.b16 %v530
          %v567 = vunpack.c.l.b16 %v531
          %v568 = vunpack.c.l.b16 %v532
          %v569 = vunpack.c.l.b16 %v533
          %v570 = vunpack.c.l.b16 %v534
          %v571 = vunpack.c.l.b16 %v535
          %v572 = vunpack.c.l.b16 %v536
          %v573 = vunpack.c.l.b16 %v537
          %v574 = vunpack.c.l.b16 %v538
          %v575 = vunpack.c.l.b16 %v539
          %v576 = vunpack.c.l.b16 %v540
          %v577 = vunpack.c.l.b16 %v541
          %v578 = vunpack.c.l.b16 %v542
          %v579 = vunpack.c.l.b16 %v543
          %v580 = vpack.c.b16 %v565, %v564
          %v581 = vpack.c.b16 %v567, %v566
          %v582 = vpack.c.b16 %v569, %v568
          %v583 = vpack.c.b16 %v571, %v570
          %v584 = vpack.c.b16 %v573, %v572
          %v585 = vpack.c.b16 %v575, %v574
          %v586 = vpack.c.b16 %v577, %v576
          %v587 = vpack.c.b16 %v579, %v578
          %596 = vmatpush.bf16.msra.mxu0 %v587
          %597 = vmatpush.bf16.msra.mxu0 %v586
          %598 = vmatpush.bf16.msra.mxu0 %v585
          %599 = vmatpush.bf16.msra.mxu0 %v584
          %600 = vmatpush.bf16.msra.mxu0 %v583
          %601 = vmatpush.bf16.msra.mxu0 %v582
          %602 = vmatpush.bf16.msra.mxu0 %v581
          %603 = vmatpush.bf16.msra.mxu0 %v580
          %604 = vmatmul.bf16.gmra.mxu0 %v527
          %v605 = vpop.f32.mrf.mxu0
          %v606 = vadd.f32 %v546, %v605
          %v607 = vpop.f32.mrf.mxu0
          %608 = vdwg.mxu0
          %v609 = vtanh.pop %v606
          %v610 = vld [vmem:[%s6] sm:$0xf]
          %v611 = vld [vmem:[%s6 + $0x4] sm:$0xf]
          %v612 = vld [vmem:[%s6 + $0x8] sm:$0xf]
          %v613 = vld [vmem:[%s6 + $0xc] sm:$0xf]
          %v614 = vld [vmem:[%s6 + $0x10] sm:$0xf]
          %v615 = vld [vmem:[%s6 + $0x14] sm:$0xf]
          %v616 = vld [vmem:[%s6 + $0x18] sm:$0xf]
          %v617 = vld [vmem:[%s6 + $0x1c] sm:$0xf]
          %v618 = vld [vmem:[%s6 + $0x20] sm:$0xf]
          %v619 = vld [vmem:[%s6 + $0x24] sm:$0xf]
          %v620 = vld [vmem:[%s6 + $0x28] sm:$0xf]
          %v621 = vld [vmem:[%s6 + $0x2c] sm:$0xf]
          %v622 = vld [vmem:[%s6 + $0x30] sm:$0xf]
          %v623 = vld [vmem:[%s6 + $0x34] sm:$0xf]
          %v624 = vld [vmem:[%s6 + $0x38] sm:$0xf]
          %v625 = vld [vmem:[%s6 + $0x3c] sm:$0xf]
          %v626 = vld [vmem:[%s7] sm:$0x1]
          %v628 = vperm.slane %v626, 0
          %v646 = vunpack.c.l.b16 %v610
          %v647 = vunpack.c.l.b16 %v611
          %v648 = vunpack.c.l.b16 %v612
          %v649 = vunpack.c.l.b16 %v613
          %v650 = vunpack.c.l.b16 %v614
          %v651 = vunpack.c.l.b16 %v615
          %v652 = vunpack.c.l.b16 %v616
          %v653 = vunpack.c.l.b16 %v617
          %v654 = vunpack.c.l.b16 %v618
          %v655 = vunpack.c.l.b16 %v619
          %v656 = vunpack.c.l.b16 %v620
          %v657 = vunpack.c.l.b16 %v621
          %v658 = vunpack.c.l.b16 %v622
          %v659 = vunpack.c.l.b16 %v623
          %v660 = vunpack.c.l.b16 %v624
          %v661 = vunpack.c.l.b16 %v625
          %v662 = vpack.c.b16 %v647, %v646
          %v663 = vpack.c.b16 %v649, %v648
          %v664 = vpack.c.b16 %v651, %v650
          %v665 = vpack.c.b16 %v653, %v652
          %v666 = vpack.c.b16 %v655, %v654
          %v667 = vpack.c.b16 %v657, %v656
          %v668 = vpack.c.b16 %v659, %v658
          %v669 = vpack.c.b16 %v661, %v660
          %678 = vmatpush.bf16.msra.mxu0 %v669
          %679 = vmatpush.bf16.msra.mxu0 %v668
          %680 = vmatpush.bf16.msra.mxu0 %v667
          %681 = vmatpush.bf16.msra.mxu0 %v666
          %682 = vmatpush.bf16.msra.mxu0 %v665
          %683 = vmatpush.bf16.msra.mxu0 %v664
          %684 = vmatpush.bf16.msra.mxu0 %v663
          %685 = vmatpush.bf16.msra.mxu0 %v662
          %686 = vmatmul.bf16.gmra.mxu0 %v527
          %v687 = vpop.f32.mrf.mxu0
          %v688 = vadd.f32 %v628, %v687
          %v689 = vpop.f32.mrf.mxu0
          %690 = vdwg.mxu0
          %v691 = vtanh.pop %v688
          %v692 = vpack.c.bf16 %v609, %v609
          %693 = vst [vmem:[#allocation2] sm:$0xf] %v692
          %v694 = vld [vmem:[%s8] sm:$0x1]
          %v696 = vperm.slane %v694, 0
          %v698 = vmul.f32 %v691, %v696
          %699 = vadd.xlane.f32.xlu0 %v698
          %v700 = vpop.xlane.xlu0 %699
          %v701 = vld [vmem:[#allocation8] sm:$0x1]
          %v703 = vperm.slane %v701, 0
          %v705 = vadd.f32 %v700, %v703
          %vm706 = vcmask 7168
          %707 = vst.msk [vmem:[#allocation7] sm:$0xff] %vm706, %v705
          %708 = vst.msk [vmem:[#allocation3] sm:$0xff] %vm706, -1e+30
          %709 = vst.msk [vmem:[#allocation4] sm:$0xff] %vm706, 0.0
          %710 = vst.msk [vmem:[#allocation5] sm:$0xff] %vm706, 0.0
          %711 = vst.msk [vmem:[#allocation6] sm:$0xff] %vm706, 0.0
        $region105: #{lm_multi_actor_critic_forward.1} parent=96 // pred_fallthru
          _
        %v712 = vld [vmem:[#allocation2] sm:$0xf]
        %v713 = vld [vmem:[%s463] sm:$0xf]
        %v714 = vld [vmem:[%s463 + $0x4] sm:$0xf]
        %v715 = vld [vmem:[%s463 + $0x8] sm:$0xf]
        %v716 = vld [vmem:[%s463 + $0xc] sm:$0xf]
        %v717 = vld [vmem:[%s463 + $0x10] sm:$0xf]
        %v718 = vld [vmem:[%s463 + $0x14] sm:$0xf]
        %v719 = vld [vmem:[%s463 + $0x18] sm:$0xf]
        %v720 = vld [vmem:[%s463 + $0x1c] sm:$0xf]
        %v721 = vld [vmem:[%s463 + $0x20] sm:$0xf]
        %v722 = vld [vmem:[%s463 + $0x24] sm:$0xf]
        %v723 = vld [vmem:[%s463 + $0x28] sm:$0xf]
        %v724 = vld [vmem:[%s463 + $0x2c] sm:$0xf]
        %v725 = vld [vmem:[%s463 + $0x30] sm:$0xf]
        %v726 = vld [vmem:[%s463 + $0x34] sm:$0xf]
        %v727 = vld [vmem:[%s463 + $0x38] sm:$0xf]
        %v728 = vld [vmem:[%s463 + $0x3c] sm:$0xf]
        %v729 = vld [vmem:[%s518] sm:$0x1]
        %v731 = vperm.slane %v729, 0
        %v749 = vunpack.c.l.b16 %v713
        %v750 = vunpack.c.l.b16 %v714
        %v751 = vunpack.c.l.b16 %v715
        %v752 = vunpack.c.l.b16 %v716
        %v753 = vunpack.c.l.b16 %v717
        %v754 = vunpack.c.l.b16 %v718
        %v755 = vunpack.c.l.b16 %v719
        %v756 = vunpack.c.l.b16 %v720
        %v757 = vunpack.c.l.b16 %v721
        %v758 = vunpack.c.l.b16 %v722
        %v759 = vunpack.c.l.b16 %v723
        %v760 = vunpack.c.l.b16 %v724
        %v761 = vunpack.c.l.b16 %v725
        %v762 = vunpack.c.l.b16 %v726
        %v763 = vunpack.c.l.b16 %v727
        %v764 = vunpack.c.l.b16 %v728
        %v765 = vpack.c.b16 %v750, %v749
        %v766 = vpack.c.b16 %v752, %v751
        %v767 = vpack.c.b16 %v754, %v753
        %v768 = vpack.c.b16 %v756, %v755
        %v769 = vpack.c.b16 %v758, %v757
        %v770 = vpack.c.b16 %v760, %v759
        %v771 = vpack.c.b16 %v762, %v761
        %v772 = vpack.c.b16 %v764, %v763
        %781 = vmatpush.bf16.msra.mxu0 %v772
        %782 = vmatpush.bf16.msra.mxu0 %v771
        %783 = vmatpush.bf16.msra.mxu0 %v770
        %784 = vmatpush.bf16.msra.mxu0 %v769
        %785 = vmatpush.bf16.msra.mxu0 %v768
        %786 = vmatpush.bf16.msra.mxu0 %v767
        %787 = vmatpush.bf16.msra.mxu0 %v766
        %788 = vmatpush.bf16.msra.mxu0 %v765
        %789 = vmatmul.bf16.gmra.mxu0 %v712
        %v790 = vpop.f32.mrf.mxu0
        %v791 = vadd.f32 %v731, %v790
        %v792 = vpop.f32.mrf.mxu0
        %793 = vdwg.mxu0
        %v794 = vld [vmem:[#allocation3] sm:$0xff]
        %v795 = vld [vmem:[#allocation4] sm:$0xff]
        %796 = vmax.xlane.f32.xlu0 %v791
        %v797 = vpop.xlane.xlu0 %796
        %v798 = vmax.f32 %v794, %v797
        %v799 = vsub.f32 %v794, %v798
        %v800 = vmul.f32 %v799, 1.442695
        %v801 = vpow.pop %v800
        %803 = vset.pattern.permute.xlu0 0
        %804 = vperm.xlu0 %803, %v798
        %v805 = vpop.permute.xlu0 %804
        %v807 = vsub.f32 %v791, %v805
        %v808 = vmul.f32 %v807, 1.442695
        %v809 = vpow.pop %v808
        %v810 = vld [vmem:[#allocation5] sm:$0xff]
        %v811 = vmul.f32 %v799, %v795
        %v812 = vadd.f32 %v810, %v811
        %v813 = vmul.f32 %v801, %v812
        %v814 = vmul.f32 %v809, %v807
        %815 = vadd.xlane.f32.xlu0 %v814
        %v816 = vpop.xlane.xlu0 %815
        %v817 = vadd.f32 %v813, %v816
        %vm818 = vcmask 7168
        %819 = vst.msk [vmem:[#allocation5] sm:$0xff] %vm818, %v817
        %v820 = vmul.f32 %v801, %v795
        %821 = vadd.xlane.f32.xlu0 %v809
        %v822 = vpop.xlane.xlu0 %821
        %v823 = vadd.f32 %v820, %v822
        %824 = vst.msk [vmem:[#allocation4] sm:$0xff] %vm818, %v823
        %825 = vst.msk [vmem:[#allocation3] sm:$0xff] %vm818, %v798
        %v826 = vlaneseq
        %v827 = vand.u32 %v826, 127
        %v828 = vld [vmem:[%s515] sm:$0xff]
        %s829 = smul.u32 %s28, 128
        %v830 = vstv %s829
        %v831 = vsub.s32 %v828, %v830
        %v832 = vld [vmem:[#allocation6] sm:$0xff]
        %833 = vset.pattern.permute.xlu0 0
        %834 = vperm.xlu0 %833, %v831
        %v835 = vpop.permute.xlu0 %834
        %vm836 = vcmp.eq.s32.totalorder %v827, %v835
        %v837 = vsel %vm836, %v791, 0.0
        %838 = vadd.xlane.f32.xlu0 %v837
        %v839 = vpop.xlane.xlu0 %838
        %v840 = vadd.f32 %v832, %v839
        %841 = vst.msk [vmem:[#allocation6] sm:$0xff] %vm818, %v840
        %p842 = scmp.eq.s32.totalorder %s28, 1
        // Predicated region
        $region106: #{lm_multi_actor_critic_forward.1} parent=96 // pred_check
          %p843 = pneg %p842
        $region107: #{lm_multi_actor_critic_forward.1} parent=96 // pred_check_branch
          %845 = sbr.rel (%p843) target = $region109
        $region108: #{lm_multi_actor_critic_forward.1} parent=96 // pred_region
          %v846 = vld [vmem:[#allocation4] sm:$0xff]
          %v847 = vlog2.pop %v846
          %v848 = vmul.f32 %v847, 0.6931472
          %v849 = vld [vmem:[#allocation6] sm:$0xff]
          %v850 = vld [vmem:[#allocation3] sm:$0xff]
          %v851 = vadd.f32 %v850, %v848
          %v852 = vsub.f32 %v849, %v851
          %v853 = vld [vmem:[#allocation5] sm:$0xff]
          %v854 = vrcp.pop %v846
          %v855 = vmul.f32 %v846, %v854
          %v856 = vsub.f32 1.0, %v855
          %v857 = vmul.f32 %v854, %v856
          %v858 = vadd.f32 %v854, %v857
          %vm859 = vweird.f32 %v846
          %vm860 = vweird.f32 %v854
          %vm861 = vmor %vm859, %vm860
          %v862 = vsel %vm861, %v854, %v858
          %v863 = vand.u32 2147483647, %v846
          %vm864 = vcmp.eq.f32.partialorder %v863, 8.507059e+37
          %v865 = vand.u32 %v846, 2147483648
          %v866 = vor.u32 1.1754944e-38, %v865
          %v867 = vsel %vm864, %v866, %v862
          %v868 = vmul.f32 %v853, %v867
          %v869 = vsub.f32 %v848, %v868
          %vm870 = vcmp.eq.s32.totalorder %v827, 0
          %vm871 = vcmp.eq.s32.totalorder %v827, 1
          %vm872 = vcmp.eq.s32.totalorder %v827, 2
          %v873 = vld [vmem:[#allocation7] sm:$0xff]
          %875 = vset.pattern.permute.xlu0 0
          %876 = vperm.xlu0 %875, %v873
          %v877 = vpop.permute.xlu0 %876
          %v879 = vsel %vm872, %v877, 0.0
          %881 = vset.pattern.permute.xlu0 0
          %882 = vperm.xlu0 %881, %v869
          %v883 = vpop.permute.xlu0 %882
          %v885 = vsel %vm871, %v883, %v879
          %887 = vset.pattern.permute.xlu0 0
          %888 = vperm.xlu0 %887, %v852
          %v889 = vpop.permute.xlu0 %888
          %v891 = vsel %vm870, %v889, %v885
          %892 = vst [vmem:[%s522] sm:$0xff] %v891
        $region109: #{lm_multi_actor_critic_forward.1} parent=96 // pred_fallthru
          _
        %p893 = scmp.lt.s32.totalorder %s27, 1
        %s894 = scalar_select %p893, %s27, 1
        %s895 = smul.addr %s894, 8
        %s896 = scalar_lea.vmem %s10, %s895
        // Predicated region
        $region110: #{lm_multi_actor_critic_forward.1} parent=96 // pred_check
          %p897 = pneg %p283
        $region111: #{lm_multi_actor_critic_forward.1} parent=96 // pred_check_branch
          %899 = sbr.rel (%p897) target = $region113
        $region112: #{lm_multi_actor_critic_forward.1} parent=96 // pred_region
          _
        $region113: #{lm_multi_actor_critic_forward.1} parent=96 // pred_fallthru
          _
      $region97: #{lm_multi_actor_critic_forward.1} parent=5 // pred_fallthru
        _
      %p900 = scmp.le.s32.totalorder 2, %s18
      // Predicated region
      $region114: #{lm_multi_actor_critic_forward.1} parent=5 // pred_check
        %p901 = pneg %p900
      $region115: #{lm_multi_actor_critic_forward.1} parent=5 // pred_check_branch
        %903 = sbr.rel (%p901) target = $region117
      $region116: #{lm_multi_actor_critic_forward.1} parent=5 // pred_region
        %s904 = ssub.s32 %s18, 2
        // Predicated region
        $region118: #{lm_multi_actor_critic_forward.1} parent=116 // pred_check
          %p905 = pneg %p289
        $region119: #{lm_multi_actor_critic_forward.1} parent=116 // pred_check_branch
          %907 = sbr.rel (%p905) target = $region121
        $region120: #{lm_multi_actor_critic_forward.1} parent=116 // pred_region
          %p908 = scmp.lt.s32.totalorder %s29, 1
          %s909 = scalar_select %p908, %s29, 1
          %s910 = smul.addr %s909, 8
          %s911 = scalar_lea.vmem %s10, %s910
        $region121: #{lm_multi_actor_critic_forward.1} parent=116 // pred_fallthru
          _
      $region117: #{lm_multi_actor_critic_forward.1} parent=5 // pred_fallthru
        _
    $region6: #{lm_multi_actor_critic_forward.1} parent=1 // loop_footer
      %s22 = sadd.s32 1, %s18
    $region7: #{lm_multi_actor_critic_forward.1} parent=1 // loop_footer_branch
      %17 = sbr.rel target = $region3
    $region8: #{lm_multi_actor_critic_forward.1} parent=1 // loop_exit
      _

</llo_original>
